<compile_context>
chip_gen: v7x
topology: tpu7x:2x2x1
jax: 0.10.0
libtpu: 0.0.40
codegen_flags: <defaults>
</compile_context>

<pallas_src>
import functools
import math

import jax
import jax.numpy as jnp
from jax.experimental import pallas as pl
from jax.experimental.pallas import tpu as pltpu

LANE = 128  # lane width (last dim of the HBM-stored output)


def _round_up(x: int, m: int) -> int:
    return ((x + m - 1) // m) * m


def _pack_multiple(dtype) -> int:
    """Minimum sublane / packing multiple for this dtype (8 f32, 16 bf16)."""
    return max(8, 32 // jnp.dtype(dtype).itemsize)


def _vmem_capacity_bytes() -> int:
    try:
        info = pltpu.get_tpu_info()
        cap = getattr(info, "vmem_capacity_bytes", None)
        if cap:
            return int(cap)
    except Exception:
        pass
    return 64 << 20  # conservative default (v7x per-TensorCore VMEM)


def _const_block_spec(shape):
    """Full-array block, constant index map, single-buffered (grid-invariant)."""
    try:
        return pl.BlockSpec(shape, lambda i: (0, 0), pipeline_mode=pl.Buffered(1))
    except TypeError:  # older jax without the pipeline_mode kwarg
        return pl.BlockSpec(shape, lambda i: (0, 0))


def _fused_fnn_kernel(*refs, n_layers: int):
    # refs = (x_ref, w0, b0, w1, b1, ..., w_{L-1}, b_{L-1}, o_ref)
    x_ref = refs[0]
    o_ref = refs[-1]
    wb = refs[1:-1]

    h = x_ref[...]
    # Unrolled Python loop is fine for small L (toy MLP).  For deep stacks of
    # equal-width hidden layers, stack W/b and use lax.fori_loop to bound the
    # per-layer activation live ranges.
    for i in range(n_layers):
        w = wb[2 * i][...]
        b = wb[2 * i + 1][...]          # pre-cast f32, shape (1, d_out_p)
        # MXU matmul with f32 accumulation; bias + ReLU epilogue in f32 on VPU.
        acc = jnp.dot(h.astype(w.dtype), w, preferred_element_type=jnp.float32)
        acc = acc + b
        if i != n_layers - 1:
            acc = jnp.maximum(acc, 0.0)  # ReLU on hidden layers only
        h = acc                          # stays vreg/VMEM resident
    o_ref[...] = h.astype(o_ref.dtype)


def simple_fnn_forward(x, params, *, compute_dtype=jnp.bfloat16, batch_tile=512):
    """Fused forward pass of SimpleFNN.

    params: list of (w, b) with w: (d_in, d_out), b: (d_out,)  (already
    transposed relative to PyTorch's (out, in) weight layout).
    """
    B, d_in0 = x.shape
    n_layers = len(params)
    assert params[0][0].shape[0] == d_in0

    pack = _pack_multiple(compute_dtype)

    # ---- feature-dim padding --------------------------------------------------
    # K dims / hidden widths -> dtype pack multiple; final output -> 128 lanes.
    dims = [d_in0] + [w.shape[1] for (w, _) in params]
    pdims = [_round_up(d, pack) for d in dims]
    pdims[-1] = _round_up(dims[-1], LANE)

    padded = []
    for li, (w, b) in enumerate(params):
        di, do = pdims[li], pdims[li + 1]
        w_p = jnp.zeros((di, do), compute_dtype).at[: w.shape[0], : w.shape[1]].set(
            w.astype(compute_dtype))
        b_p = jnp.zeros((1, do), jnp.float32).at[0, : b.shape[0]].set(
            b.astype(jnp.float32))
        padded.append((w_p, b_p))

    # ---- batch padding & tile selection --------------------------------------
    B_p = _round_up(B, pack)
    tb = max(pack, min(_round_up(batch_tile, pack), B_p))
    if pl.cdiv(B_p, tb) < 2 and B_p >= 2 * pack:
        # Guarantee >= 2 batch tiles so both v7x TensorCores get work.
        tb = _round_up(pl.cdiv(B_p, 2), pack)
    n_tiles = pl.cdiv(B_p, tb)

    x_p = jnp.zeros((B_p, pdims[0]), compute_dtype).at[:B, :d_in0].set(
        x.astype(compute_dtype))

    in_specs = [pl.BlockSpec((tb, pdims[0]), lambda i: (i, 0))]
    flat_wb = []
    for (w_p, b_p) in padded:
        in_specs.append(_const_block_spec(w_p.shape))   # VMEM-resident, 1-buffered
        in_specs.append(_const_block_spec(b_p.shape))
        flat_wb += [w_p, b_p]

    out_dtype = x.dtype
    d_out_p = pdims[-1]

    # ---- generation-aware VMEM budget -----------------------------------------
    c_item = jnp.dtype(compute_dtype).itemsize
    o_item = jnp.dtype(out_dtype).itemsize
    wb_bytes = sum(int(a.size) * a.dtype.itemsize for a in flat_wb)  # 1-buffered
    x_tile = tb * pdims[0] * c_item
    o_tile = tb * d_out_p * o_item
    act_bytes = 2 * tb * max(pdims) * 4          # live f32 activations (rough)
    est = 2 * x_tile + 2 * o_tile + wb_bytes + act_bytes
    cap = int(0.75 * _vmem_capacity_bytes())     # ~48 MiB v7x, ~96 MiB v5e/v6e
    if est > cap:
        # TODO(synk): stream weights per layer (memory_space=pl.ANY +
        # pltpu.emit_pipeline, or an extra "arbitrary" grid axis) instead of
        # keeping all layers VMEM-resident when widths get large.
        raise ValueError(
            f"resident-weight footprint {est / 2**20:.1f} MiB exceeds VMEM "
            f"budget {cap / 2**20:.1f} MiB; reduce batch_tile or layer widths")
    vmem_limit = int(min(max(est + (8 << 20), 16 << 20), cap))

    flops = int(sum(2 * B_p * w_p.shape[0] * w_p.shape[1] for (w_p, _) in padded))
    bytes_accessed = int(x_p.size * c_item + wb_bytes + B_p * d_out_p * o_item)

    kernel = functools.partial(_fused_fnn_kernel, n_layers=n_layers)
    out_p = pl.pallas_call(
        kernel,
        out_shape=jax.ShapeDtypeStruct((B_p, d_out_p), out_dtype),
        grid_spec=pltpu.PrefetchScalarGridSpec(
            num_scalar_prefetch=0,
            grid=(n_tiles,),
            in_specs=in_specs,
            out_specs=pl.BlockSpec((tb, d_out_p), lambda i: (i, 0)),
        ),
        compiler_params=pltpu.CompilerParams(
            dimension_semantics=("parallel",),   # batch tiles shard across TCs
            vmem_limit_bytes=vmem_limit,
        ),
        cost_estimate=pl.CostEstimate(
            flops=flops, transcendentals=0, bytes_accessed=bytes_accessed),
    )(x_p, *flat_wb)

    # Strip batch / feature padding.
    return out_p[:B, : dims[-1]]


def init_simple_fnn_params(key, n_input, n_hidden, n_hidden_layers, n_output,
                           dtype=jnp.float32):
    """nn.Linear default init: U(-1/sqrt(fan_in), 1/sqrt(fan_in)); weights are
    stored as (in_features, out_features)."""
    params = []
    dims = [(n_input if i == 0 else n_hidden, n_hidden)
            for i in range(n_hidden_layers)]
    dims.append((n_hidden if n_hidden_layers > 0 else n_input, n_output))
    for (d_in, d_out) in dims:
        key, kw, kb = jax.random.split(key, 3)
        bound = 1.0 / math.sqrt(d_in)
        w = jax.random.uniform(kw, (d_in, d_out), dtype, minval=-bound, maxval=bound)
        b = jax.random.uniform(kb, (d_out,), dtype, minval=-bound, maxval=bound)
        params.append((w, b))
    return params


def simple_fnn_ref(x, params):
    n_layers = len(params)
    for idx, (w, b) in enumerate(params):
        x = x @ w + b
        if idx != n_layers - 1:
            x = jnp.maximum(x, 0.0)
    return x


if __name__ == "__main__":
    # Small config consistent with the module: SimpleFNN(16, 32, 2, 8)
    batch = 8
    n_input = 16
    n_hidden = 32
    n_hidden_layers = 2
    n_output = 8

    key = jax.random.PRNGKey(0)
    key, kx = jax.random.split(key)
    x = jax.random.normal(kx, (batch, n_input), jnp.float32)
    params = init_simple_fnn_params(key, n_input, n_hidden, n_hidden_layers, n_output)

    ref = simple_fnn_ref(x, params)

    # Default (performance) path: bf16 MXU operands, f32 accumulate + epilogue.
    out_bf16 = jax.block_until_ready(simple_fnn_forward(x, params))
    assert out_bf16.shape == (batch, n_output)
    assert jnp.allclose(out_bf16.astype(jnp.float32), ref, atol=3e-2, rtol=3e-2), \
        "bf16 path mismatch vs reference"

    # Strict-parity path: f32 operands, exact vs the f32 reference.
    out_f32 = jax.block_until_ready(
        simple_fnn_forward(x, params, compute_dtype=jnp.float32))
    assert out_f32.shape == (batch, n_output)
    assert jnp.allclose(out_f32, ref, atol=1e-5, rtol=1e-5), \
        "f32 path mismatch vs reference"

    print("KERNEL_OK")
</pallas_src>

<mosaic_0001>
module attributes {stable_mosaic.version = 11 : i64} {
  func.func @_fused_fnn_kernel(%arg0: i32, %arg1: memref<16x16xbf16, #tpu.memory_space<vmem>>, %arg2: memref<16x32xbf16, #tpu.memory_space<vmem>>, %arg3: memref<1x32xf32, #tpu.memory_space<vmem>>, %arg4: memref<32x32xbf16, #tpu.memory_space<vmem>>, %arg5: memref<1x32xf32, #tpu.memory_space<vmem>>, %arg6: memref<32x128xbf16, #tpu.memory_space<vmem>>, %arg7: memref<1x128xf32, #tpu.memory_space<vmem>>, %arg8: memref<16x128xf32, #tpu.memory_space<vmem>>) attributes {dimension_semantics = [#tpu.dimension_semantics<parallel>], iteration_bounds = array<i64: 1>, scalar_prefetch = 0 : i64, scratch_operands = 0 : i64, tpu.core_type = #tpu.core_type<tc>, window_params = [{transform_indices = @transform_0, window_bounds = array<i64: 16, 16>}, {pipeline_mode = #tpu.pipeline_mode<synchronous>, transform_indices = @transform_1, window_bounds = array<i64: 16, 32>}, {pipeline_mode = #tpu.pipeline_mode<synchronous>, transform_indices = @transform_2, window_bounds = array<i64: 1, 32>}, {pipeline_mode = #tpu.pipeline_mode<synchronous>, transform_indices = @transform_3, window_bounds = array<i64: 32, 32>}, {pipeline_mode = #tpu.pipeline_mode<synchronous>, transform_indices = @transform_4, window_bounds = array<i64: 1, 32>}, {pipeline_mode = #tpu.pipeline_mode<synchronous>, transform_indices = @transform_5, window_bounds = array<i64: 32, 128>}, {pipeline_mode = #tpu.pipeline_mode<synchronous>, transform_indices = @transform_6, window_bounds = array<i64: 1, 128>}, {transform_indices = @transform_7, window_bounds = array<i64: 16, 128>}]} {
    %c0 = arith.constant 0 : index
    %c0_0 = arith.constant 0 : index
    %0 = vector.load %arg1[%c0, %c0_0] : memref<16x16xbf16, #tpu.memory_space<vmem>>, vector<16x16xbf16>
    %c0_1 = arith.constant 0 : index
    %c0_2 = arith.constant 0 : index
    %1 = vector.load %arg2[%c0_1, %c0_2] : memref<16x32xbf16, #tpu.memory_space<vmem>>, vector<16x32xbf16>
    %c0_3 = arith.constant 0 : index
    %c0_4 = arith.constant 0 : index
    %2 = vector.load %arg3[%c0_3, %c0_4] : memref<1x32xf32, #tpu.memory_space<vmem>>, vector<1x32xf32>
    %cst = arith.constant dense<0.000000e+00> : vector<16x32xf32>
    %3 = tpu.matmul %0, %1, %cst {dimension_numbers = #tpu.dot_dimension_numbers<[1], [0], [0], [1], [0, 0, 1, 1], [], []>} : vector<16x16xbf16>, vector<16x32xbf16>, vector<16x32xf32> -> vector<16x32xf32>
    %4 = vector.broadcast %2 : vector<1x32xf32> to vector<16x32xf32>
    %5 = arith.addf %3, %4 : vector<16x32xf32>
    %cst_5 = arith.constant 0.000000e+00 : f32
    %6 = vector.broadcast %cst_5 : f32 to vector<16x32xf32>
    %7 = arith.maximumf %5, %6 : vector<16x32xf32>
    %c0_6 = arith.constant 0 : index
    %c0_7 = arith.constant 0 : index
    %8 = vector.load %arg4[%c0_6, %c0_7] : memref<32x32xbf16, #tpu.memory_space<vmem>>, vector<32x32xbf16>
    %c0_8 = arith.constant 0 : index
    %c0_9 = arith.constant 0 : index
    %9 = vector.load %arg5[%c0_8, %c0_9] : memref<1x32xf32, #tpu.memory_space<vmem>>, vector<1x32xf32>
    %10 = arith.truncf %7 : vector<16x32xf32> to vector<16x32xbf16>
    %cst_10 = arith.constant dense<0.000000e+00> : vector<16x32xf32>
    %11 = tpu.matmul %10, %8, %cst_10 {dimension_numbers = #tpu.dot_dimension_numbers<[1], [0], [0], [1], [0, 0, 1, 1], [], []>} : vector<16x32xbf16>, vector<32x32xbf16>, vector<16x32xf32> -> vector<16x32xf32>
    %12 = vector.broadcast %9 : vector<1x32xf32> to vector<16x32xf32>
    %13 = arith.addf %11, %12 : vector<16x32xf32>
    %cst_11 = arith.constant 0.000000e+00 : f32
    %14 = vector.broadcast %cst_11 : f32 to vector<16x32xf32>
    %15 = arith.maximumf %13, %14 : vector<16x32xf32>
    %c0_12 = arith.constant 0 : index
    %c0_13 = arith.constant 0 : index
    %16 = vector.load %arg6[%c0_12, %c0_13] : memref<32x128xbf16, #tpu.memory_space<vmem>>, vector<32x128xbf16>
    %c0_14 = arith.constant 0 : index
    %c0_15 = arith.constant 0 : index
    %17 = vector.load %arg7[%c0_14, %c0_15] : memref<1x128xf32, #tpu.memory_space<vmem>>, vector<1x128xf32>
    %18 = arith.truncf %15 : vector<16x32xf32> to vector<16x32xbf16>
    %cst_16 = arith.constant dense<0.000000e+00> : vector<16x128xf32>
    %19 = tpu.matmul %18, %16, %cst_16 {dimension_numbers = #tpu.dot_dimension_numbers<[1], [0], [0], [1], [0, 0, 1, 1], [], []>} : vector<16x32xbf16>, vector<32x128xbf16>, vector<16x128xf32> -> vector<16x128xf32>
    %20 = vector.broadcast %17 : vector<1x128xf32> to vector<16x128xf32>
    %21 = arith.addf %19, %20 : vector<16x128xf32>
    %c0_17 = arith.constant 0 : index
    %c0_18 = arith.constant 0 : index
    %22 = vector.load %arg8[%c0_17, %c0_18] : memref<16x128xf32, #tpu.memory_space<vmem>>, vector<16x128xf32>
    tpu.vector_store %arg8[%c0_17, %c0_18], %21 {strides = array<i32>} : memref<16x128xf32, #tpu.memory_space<vmem>>, vector<16x128xf32>,
    return
  }
  func.func @transform_0(%arg0: i32) -> (i32, i32) {
    %c0_i32 = arith.constant 0 : i32
    %c0_i32_0 = arith.constant 0 : i32
    return %arg0, %c0_i32 : i32, i32
  }
  func.func @transform_1(%arg0: i32) -> (i32, i32) {
    %c0_i32 = arith.constant 0 : i32
    %c0_i32_0 = arith.constant 0 : i32
    %c0_i32_1 = arith.constant 0 : i32
    return %c0_i32, %c0_i32_0 : i32, i32
  }
  func.func @transform_2(%arg0: i32) -> (i32, i32) {
    %c0_i32 = arith.constant 0 : i32
    %c0_i32_0 = arith.constant 0 : i32
    %c0_i32_1 = arith.constant 0 : i32
    return %c0_i32, %c0_i32_0 : i32, i32
  }
  func.func @transform_3(%arg0: i32) -> (i32, i32) {
    %c0_i32 = arith.constant 0 : i32
    %c0_i32_0 = arith.constant 0 : i32
    %c0_i32_1 = arith.constant 0 : i32
    return %c0_i32, %c0_i32_0 : i32, i32
  }
  func.func @transform_4(%arg0: i32) -> (i32, i32) {
    %c0_i32 = arith.constant 0 : i32
    %c0_i32_0 = arith.constant 0 : i32
    %c0_i32_1 = arith.constant 0 : i32
    return %c0_i32, %c0_i32_0 : i32, i32
  }
  func.func @transform_5(%arg0: i32) -> (i32, i32) {
    %c0_i32 = arith.constant 0 : i32
    %c0_i32_0 = arith.constant 0 : i32
    %c0_i32_1 = arith.constant 0 : i32
    return %c0_i32, %c0_i32_0 : i32, i32
  }
  func.func @transform_6(%arg0: i32) -> (i32, i32) {
    %c0_i32 = arith.constant 0 : i32
    %c0_i32_0 = arith.constant 0 : i32
    %c0_i32_1 = arith.constant 0 : i32
    return %c0_i32, %c0_i32_0 : i32, i32
  }
  func.func @transform_7(%arg0: i32) -> (i32, i32) {
    %c0_i32 = arith.constant 0 : i32
    %c0_i32_0 = arith.constant 0 : i32
    return %arg0, %c0_i32 : i32, i32
  }
}

</mosaic_0001>

<llo_original>
// kernel: tpu_custom_call.1
$region0: #{tpu_custom_call.1}
  #allocation0 [shape = 'u32[]', space=smem, size = 0x4, offset = 0x4, fixed_abs, tag = 'smem constant byte address 0x4 - core index']
  #allocation1 [shape = 'u32[144,128]{1,0:T(1,128)}', space=vmem, size = 0x12000, scoped, tag = 'internal scratch']
  %s0 = inlined_call_operand.hbm [shape: bf16[16,16], index: 0, kind: input, shape index: {}]
  %s1 = inlined_call_operand.hbm [shape: bf16[16,32], index: 1, kind: input, shape index: {}]
  %s2 = inlined_call_operand.vmem [shape: f32[1,32], index: 2, kind: input, shape index: {}]
  %s3 = inlined_call_operand.hbm [shape: bf16[32,32], index: 3, kind: input, shape index: {}]
  %s4 = inlined_call_operand.vmem [shape: f32[1,32], index: 4, kind: input, shape index: {}]
  %s5 = inlined_call_operand.vmem [shape: bf16[32,128], index: 5, kind: input, shape index: {}]
  %s6 = inlined_call_operand.vmem [shape: f32[1,128], index: 6, kind: input, shape index: {}]
  %s7 = inlined_call_operand.hbm [shape: f32[16,128], index: 7, kind: output, shape index: {}]
  %s8 = sld [smem:[#allocation0]]
  $region50: #{tpu_custom_call.1} parent=0
    _
  %s10 = ssub.s32 1, %s8
  %s11 = scalar_select 0, %s10, %s8
  $region1: #{tpu_custom_call.1} parent=0
    #allocation2 [shape = 'u8[4096]{0}', space=vmem, size = 0x1000, scoped, tag = 'input window, operand 0, single buffered']
    #allocation3 [shape = 's32[1]{0}', space=sflag, size = 0x4, scoped, tag = 'scoped memory for tpu_custom_call.1']
    #allocation4 [shape = 's32[1]{0}', space=sflag, size = 0x4, scoped, tag = 'scoped memory for tpu_custom_call.1']
    #allocation5 [shape = 'u8[4096]{0}', space=vmem, size = 0x1000, scoped, tag = 'input window, operand 1, single buffered']
    #allocation6 [shape = 's32[1]{0}', space=sflag, size = 0x4, scoped, tag = 'scoped memory for tpu_custom_call.1']
    #allocation7 [shape = 'u8[8192]{0}', space=vmem, size = 0x2000, scoped, tag = 'input window, operand 3, single buffered']
    #allocation8 [shape = 'u8[8192]{0}', space=vmem, size = 0x2000, scoped, tag = 'output window, operand 0, single buffered']
    %12 = vsyncpa [#allocation3], 0
    %13 = vsyncpa [#allocation6], 0
    %14 = vsyncpa [#allocation4], 0
    // Predicated region
    $region2: #{tpu_custom_call.1} parent=1 // pred_check
      _
    $region3: #{tpu_custom_call.1} parent=1 // pred_check_branch
      %16 = sbr.rel (0) target = $region5
    $region4: #{tpu_custom_call.1} parent=1 // pred_region
      %s18 = ssub.s32 128, 128
      %19 = vsyncadd [#allocation3], %s18
      %s20 = sshll.u32 [#allocation2], 4
      %s21 = int_to_ptr.vmem [resolvable:$true] %s20
      %26 = dma.hbm_to_vmem [thread:$0]  %s0, 128, %s21, [#allocation3], 64, 64, 4
    $region5: #{tpu_custom_call.1} parent=1 // pred_fallthru
      _
    // Predicated region
    $region6: #{tpu_custom_call.1} parent=1 // pred_check
      _
    $region7: #{tpu_custom_call.1} parent=1 // pred_check_branch
      %28 = sbr.rel (0) target = $region9
    $region8: #{tpu_custom_call.1} parent=1 // pred_region
      %s30 = ssub.s32 128, 128
      %31 = vsyncadd [#allocation6], %s30
      %s32 = sshll.u32 [#allocation5], 4
      %s33 = int_to_ptr.vmem [resolvable:$true] %s32
      %38 = dma.hbm_to_vmem [thread:$0]  %s1, 128, %s33, [#allocation6], 64, 64, 4
    $region9: #{tpu_custom_call.1} parent=1 // pred_fallthru
      _
    // Predicated region
    $region10: #{tpu_custom_call.1} parent=1 // pred_check
      _
    $region11: #{tpu_custom_call.1} parent=1 // pred_check_branch
      %40 = sbr.rel (0) target = $region13
    $region12: #{tpu_custom_call.1} parent=1 // pred_region
      _
    $region13: #{tpu_custom_call.1} parent=1 // pred_fallthru
      _
    // Predicated region
    $region14: #{tpu_custom_call.1} parent=1 // pred_check
      _
    $region15: #{tpu_custom_call.1} parent=1 // pred_check_branch
      %42 = sbr.rel (0) target = $region17
    $region16: #{tpu_custom_call.1} parent=1 // pred_region
      %s44 = ssub.s32 256, 256
      %45 = vsyncadd [#allocation6], %s44
      %s46 = sshll.u32 [#allocation7], 4
      %s47 = int_to_ptr.vmem [resolvable:$true] %s46
      %52 = dma.hbm_to_vmem [thread:$0]  %s3, 256, %s47, [#allocation6], 64, 64, 4
    $region17: #{tpu_custom_call.1} parent=1 // pred_fallthru
      _
    // Predicated region
    $region18: #{tpu_custom_call.1} parent=1 // pred_check
      _
    $region19: #{tpu_custom_call.1} parent=1 // pred_check_branch
      %54 = sbr.rel (0) target = $region21
    $region20: #{tpu_custom_call.1} parent=1 // pred_region
      _
    $region21: #{tpu_custom_call.1} parent=1 // pred_fallthru
      _
    // Predicated region
    $region22: #{tpu_custom_call.1} parent=1 // pred_check
      _
    $region23: #{tpu_custom_call.1} parent=1 // pred_check_branch
      %56 = sbr.rel (0) target = $region25
    $region24: #{tpu_custom_call.1} parent=1 // pred_region
      _
    $region25: #{tpu_custom_call.1} parent=1 // pred_fallthru
      _
    // Predicated region
    $region26: #{tpu_custom_call.1} parent=1 // pred_check
      _
    $region27: #{tpu_custom_call.1} parent=1 // pred_check_branch
      %58 = sbr.rel (0) target = $region29
    $region28: #{tpu_custom_call.1} parent=1 // pred_region
      _
    $region29: #{tpu_custom_call.1} parent=1 // pred_fallthru
      _
    // Predicated region
    $region30: #{tpu_custom_call.1} parent=1 // pred_check
      _
    $region31: #{tpu_custom_call.1} parent=1 // pred_check_branch
      %60 = sbr.rel (0) target = $region33
    $region32: #{tpu_custom_call.1} parent=1 // pred_region
      %61 = dma.done [#allocation3], 128
    $region33: #{tpu_custom_call.1} parent=1 // pred_fallthru
      _
    // Predicated region
    $region34: #{tpu_custom_call.1} parent=1 // pred_check
      _
    $region35: #{tpu_custom_call.1} parent=1 // pred_check_branch
      %63 = sbr.rel (0) target = $region37
    $region36: #{tpu_custom_call.1} parent=1 // pred_region
      %64 = dma.done [#allocation6], 128
    $region37: #{tpu_custom_call.1} parent=1 // pred_fallthru
      _
    // Predicated region
    $region38: #{tpu_custom_call.1} parent=1 // pred_check
      _
    $region39: #{tpu_custom_call.1} parent=1 // pred_check_branch
      %66 = sbr.rel (0) target = $region41
    $region40: #{tpu_custom_call.1} parent=1 // pred_region
      %67 = dma.done [#allocation6], 256
    $region41: #{tpu_custom_call.1} parent=1 // pred_fallthru
      _
    %v69 = vld [vmem:[#allocation2] sm:$0xf]
    %v70 = vld [vmem:[#allocation2 + $0x4] sm:$0xf]
    %v71 = vld [vmem:[#allocation5] sm:$0xf]
    %v72 = vld [vmem:[#allocation5 + $0x4] sm:$0xf]
    %v73 = vld [vmem:[%s2] sm:$0x1]
    %v75 = vlaneseq
    %v76 = vshrl.u32 %v75, 7
    %v77 = vsub.s32 0, %v76
    %v78 = vrot.slane %v73, %v77
    %v82 = vunpack.c.l.b16 %v69
    %v83 = vunpack.c.l.b16 %v70
    %v84 = vpack.c.b16 %v83, %v82
    %v87 = vunpack.c.l.b16 %v71
    %v88 = vunpack.c.l.b16 %v72
    %v89 = vpack.c.b16 %v88, %v87
    %vm91 = vcmask 130048
    %v93 = vsel %vm91, %v84, 0
    %95 = vmatprep.subr.bf16.mxu0 0
    %96 = vmatpush1.bf16.msra.mxu0 %v89
    %97 = vmatprep.subr.bf16.mxu0 0
    %98 = vmatpush1.bf16.msra.mxu0 0
    %99 = vmatprep.subr.bf16.mxu0 0
    %100 = vmatpush1.bf16.msra.mxu0 0
    %101 = vmatprep.subr.bf16.mxu0 0
    %102 = vmatpush1.bf16.msra.mxu0 0
    %103 = vmatprep.subr.bf16.mxu0 0
    %104 = vmatpush1.bf16.msra.mxu0 0
    %105 = vmatprep.subr.bf16.mxu0 0
    %106 = vmatpush1.bf16.msra.mxu0 0
    %107 = vmatprep.subr.bf16.mxu0 0
    %108 = vmatpush1.bf16.msra.mxu0 0
    %109 = vmatprep.subr.bf16.mxu0 0
    %110 = vmatpush1.bf16.msra.mxu0 0
    %111 = vmatprep.subr.bf16.mxu0 0
    %112 = vmatpush1.bf16.msra.mxu0 0
    %113 = vmatprep.subr.bf16.mxu0 0
    %114 = vmatpush1.bf16.msra.mxu0 0
    %115 = vmatprep.subr.bf16.mxu0 0
    %116 = vmatpush1.bf16.msra.mxu0 0
    %117 = vmatprep.subr.bf16.mxu0 0
    %118 = vmatpush1.bf16.msra.mxu0 0
    %119 = vmatprep.subr.bf16.mxu0 0
    %120 = vmatpush1.bf16.msra.mxu0 0
    %121 = vmatprep.subr.bf16.mxu0 0
    %122 = vmatpush1.bf16.msra.mxu0 0
    %123 = vmatprep.subr.bf16.mxu0 0
    %124 = vmatpush1.bf16.msra.mxu0 0
    %125 = vmatprep.subr.bf16.mxu0 0
    %126 = vmatpush1.bf16.msra.mxu0 0
    %127 = vmatprep.mubr.bf16.mxu0 0
    %128 = vmatmul.mubr.bf16.gmra.mrb[0].mxu0 %v93
    %v129 = vpop.f32.mrb[0].mxu0
    %v130 = vadd.f32 %v78, %v129
    %v131 = vpop.f32.mrb[0].mxu0
    %v132 = vpop.f32.mrb[0].mxu0
    %v133 = vadd.f32 %v78, %v132
    %v134 = vpop.f32.mrb[0].mxu0
    %135 = vdwg.mxu0
    %v136 = vmax.f32 %v130, 0.0
    %v137 = vmax.f32 %v133, 0.0
    %v138 = vld [vmem:[#allocation7] sm:$0xf]
    %v139 = vld [vmem:[#allocation7 + $0x4] sm:$0xf]
    %v140 = vld [vmem:[#allocation7 + $0x8] sm:$0xf]
    %v141 = vld [vmem:[#allocation7 + $0xc] sm:$0xf]
    %v142 = vld [vmem:[%s4] sm:$0x1]
    %v143 = vpack.c.bf16 %v137, %v136
    %v145 = vlaneseq
    %v146 = vshrl.u32 %v145, 7
    %v147 = vsub.s32 0, %v146
    %v148 = vrot.slane %v142, %v147
    %v154 = vunpack.c.l.b16 %v138
    %v155 = vunpack.c.l.b16 %v139
    %v156 = vunpack.c.l.b16 %v140
    %v157 = vunpack.c.l.b16 %v141
    %v158 = vpack.c.b16 %v155, %v154
    %v159 = vpack.c.b16 %v157, %v156
    %vm162 = vcmask 261120
    %v164 = vsel %vm162, %v143, 0
    %166 = vmatprep.subr.bf16.mxu0 0
    %167 = vmatpush1.bf16.msra.mxu0 %v158
    %168 = vmatprep.subr.bf16.mxu0 0
    %169 = vmatpush1.bf16.msra.mxu0 %v159
    %170 = vmatprep.subr.bf16.mxu0 0
    %171 = vmatpush1.bf16.msra.mxu0 0
    %172 = vmatprep.subr.bf16.mxu0 0
    %173 = vmatpush1.bf16.msra.mxu0 0
    %174 = vmatprep.subr.bf16.mxu0 0
    %175 = vmatpush1.bf16.msra.mxu0 0
    %176 = vmatprep.subr.bf16.mxu0 0
    %177 = vmatpush1.bf16.msra.mxu0 0
    %178 = vmatprep.subr.bf16.mxu0 0
    %179 = vmatpush1.bf16.msra.mxu0 0
    %180 = vmatprep.subr.bf16.mxu0 0
    %181 = vmatpush1.bf16.msra.mxu0 0
    %182 = vmatprep.subr.bf16.mxu0 0
    %183 = vmatpush1.bf16.msra.mxu0 0
    %184 = vmatprep.subr.bf16.mxu0 0
    %185 = vmatpush1.bf16.msra.mxu0 0
    %186 = vmatprep.subr.bf16.mxu0 0
    %187 = vmatpush1.bf16.msra.mxu0 0
    %188 = vmatprep.subr.bf16.mxu0 0
    %189 = vmatpush1.bf16.msra.mxu0 0
    %190 = vmatprep.subr.bf16.mxu0 0
    %191 = vmatpush1.bf16.msra.mxu0 0
    %192 = vmatprep.subr.bf16.mxu0 0
    %193 = vmatpush1.bf16.msra.mxu0 0
    %194 = vmatprep.subr.bf16.mxu0 0
    %195 = vmatpush1.bf16.msra.mxu0 0
    %196 = vmatprep.subr.bf16.mxu0 0
    %197 = vmatpush1.bf16.msra.mxu0 0
    %198 = vmatprep.mubr.bf16.mxu0 0
    %199 = vmatmul.mubr.bf16.gmra.mrb[0].mxu0 %v164
    %v200 = vpop.f32.mrb[0].mxu0
    %v201 = vadd.f32 %v148, %v200
    %v202 = vpop.f32.mrb[0].mxu0
    %v203 = vpop.f32.mrb[0].mxu0
    %v204 = vadd.f32 %v148, %v203
    %v205 = vpop.f32.mrb[0].mxu0
    %206 = vdwg.mxu0
    %v207 = vmax.f32 %v201, 0.0
    %v208 = vmax.f32 %v204, 0.0
    %v209 = vld [vmem:[%s5] sm:$0xf]
    %v210 = vld [vmem:[%s5 + $0x4] sm:$0xf]
    %v211 = vld [vmem:[%s5 + $0x8] sm:$0xf]
    %v212 = vld [vmem:[%s5 + $0xc] sm:$0xf]
    %v213 = vld [vmem:[%s6] sm:$0x1]
    %v214 = vpack.c.bf16 %v208, %v207
    %v216 = vlaneseq
    %v217 = vshrl.u32 %v216, 7
    %v218 = vsub.s32 0, %v217
    %v219 = vrot.slane %v213, %v218
    %v225 = vunpack.c.l.b16 %v209
    %v226 = vunpack.c.l.b16 %v210
    %v227 = vunpack.c.l.b16 %v211
    %v228 = vunpack.c.l.b16 %v212
    %v229 = vpack.c.b16 %v226, %v225
    %v230 = vpack.c.b16 %v228, %v227
    %v234 = vsel %vm162, %v214, 0
    %236 = vmatprep.subr.bf16.mxu0 0
    %237 = vmatpush1.bf16.msra.mxu0 %v229
    %238 = vmatprep.subr.bf16.mxu0 0
    %239 = vmatpush1.bf16.msra.mxu0 %v230
    %240 = vmatprep.subr.bf16.mxu0 0
    %241 = vmatpush1.bf16.msra.mxu0 0
    %242 = vmatprep.subr.bf16.mxu0 0
    %243 = vmatpush1.bf16.msra.mxu0 0
    %244 = vmatprep.subr.bf16.mxu0 0
    %245 = vmatpush1.bf16.msra.mxu0 0
    %246 = vmatprep.subr.bf16.mxu0 0
    %247 = vmatpush1.bf16.msra.mxu0 0
    %248 = vmatprep.subr.bf16.mxu0 0
    %249 = vmatpush1.bf16.msra.mxu0 0
    %250 = vmatprep.subr.bf16.mxu0 0
    %251 = vmatpush1.bf16.msra.mxu0 0
    %252 = vmatprep.subr.bf16.mxu0 0
    %253 = vmatpush1.bf16.msra.mxu0 0
    %254 = vmatprep.subr.bf16.mxu0 0
    %255 = vmatpush1.bf16.msra.mxu0 0
    %256 = vmatprep.subr.bf16.mxu0 0
    %257 = vmatpush1.bf16.msra.mxu0 0
    %258 = vmatprep.subr.bf16.mxu0 0
    %259 = vmatpush1.bf16.msra.mxu0 0
    %260 = vmatprep.subr.bf16.mxu0 0
    %261 = vmatpush1.bf16.msra.mxu0 0
    %262 = vmatprep.subr.bf16.mxu0 0
    %263 = vmatpush1.bf16.msra.mxu0 0
    %264 = vmatprep.subr.bf16.mxu0 0
    %265 = vmatpush1.bf16.msra.mxu0 0
    %266 = vmatprep.subr.bf16.mxu0 0
    %267 = vmatpush1.bf16.msra.mxu0 0
    %268 = vmatprep.mubr.bf16.mxu0 0
    %269 = vmatmul.mubr.bf16.gmra.mrb[0].mxu0 %v234
    %v270 = vpop.f32.mrb[0].mxu0
    %v271 = vadd.f32 %v219, %v270
    %v272 = vpop.f32.mrb[0].mxu0
    %v273 = vpop.f32.mrb[0].mxu0
    %v274 = vadd.f32 %v219, %v273
    %v275 = vpop.f32.mrb[0].mxu0
    %276 = vdwg.mxu0
    %277 = vst [vmem:[#allocation8] sm:$0xff] %v271
    %278 = vst [vmem:[#allocation8 + $0x8] sm:$0xff] %v274
    // Predicated region
    $region42: #{tpu_custom_call.1} parent=1 // pred_check
      _
    $region43: #{tpu_custom_call.1} parent=1 // pred_check_branch
      %280 = sbr.rel (0) target = $region45
    $region44: #{tpu_custom_call.1} parent=1 // pred_region
      %s282 = ssub.s32 256, 256
      %283 = vsyncadd [#allocation4], %s282
      %s284 = sshll.u32 [#allocation8], 4
      %s285 = int_to_ptr.vmem [resolvable:$true] %s284
      %290 = dma.vmem_to_hbm [thread:$0]  %s285, 256, %s7, [#allocation4], 128, 128, 8
    $region45: #{tpu_custom_call.1} parent=1 // pred_fallthru
      _
    // Predicated region
    $region46: #{tpu_custom_call.1} parent=1 // pred_check
      _
    $region47: #{tpu_custom_call.1} parent=1 // pred_check_branch
      %292 = sbr.rel (0) target = $region49
    $region48: #{tpu_custom_call.1} parent=1 // pred_region
      %293 = dma.done [#allocation4], 256
    $region49: #{tpu_custom_call.1} parent=1 // pred_fallthru
      _
    %294 = vsyncpa [#allocation3], 1
    %295 = vsyncpa [#allocation6], 1
    %296 = vsyncpa [#allocation4], 1

</llo_original>
